<compile_context>
chip_gen: v7x
topology: tpu7x:2x2x1
jax: 0.10.0
libtpu: 0.0.40
codegen_flags: <defaults>
</compile_context>

<pallas_src>
import functools

import jax
import jax.numpy as jnp
import numpy as np
from jax.experimental import pallas as pl
from jax.experimental.pallas import tpu as pltpu

EPS = 1e-5
_TL_TARGET = 512  # lane-tile target: multiple of 128, VMEM-safe on v5e/v6e/v7x


def conv_block(x, conv_w, conv_b, bn_gamma, bn_beta,
               kernel_size, dilation=1, stride=1):
    """x: (N, Cin, L) f32; conv_w: (Cout, Cin, K). Returns (N, Cout, L_out) f32."""
    if stride != 1:
        # TODO(synk): stride > 1 needs strided output-position slicing; the
        # ConvBlock default (stride=1) is what is implemented here.
        raise NotImplementedError("conv_block Pallas kernel supports stride=1")

    N, Cin, L = x.shape
    Cout, _, K = conv_w.shape
    pad = dilation * (kernel_size - 1) // 2
    L_out = L + 2 * pad - dilation * (K - 1)

    # --- tile the length (lane) axis: TL is a multiple of 128 or the full L_out.
    TL = L_out if L_out <= _TL_TARGET else _TL_TARGET
    nT = -(-L_out // TL)
    L_padT = nT * TL
    need_mask = L_padT != L_out

    # --- K lane-aligned shifted views of the zero-padded input (no gather).
    halo = dilation * (K - 1)
    right = L_padT + halo - pad - L                      # >= 0 by construction
    xp = jnp.pad(x, ((0, 0), (0, 0), (pad, right)))
    x_shifts = jnp.stack(
        [xp[:, :, k * dilation: k * dilation + L_padT] for k in range(K)],
        axis=0)                                          # (K, N, Cin, L_padT)
    w = jnp.transpose(conv_w, (2, 0, 1))                 # (K, Cout, Cin)
    del conv_b  # cancels exactly under training-mode BatchNorm (mean/var invariant)

    x_spec = pl.BlockSpec((K, 1, Cin, TL), lambda n, j: (0, n, 0, j))
    w_spec = pl.BlockSpec((K, Cout, Cin), lambda n, j: (0, 0, 0))
    conv_flops = 2 * K * Cin * Cout * N * L_padT
    in_bytes = x_shifts.size * 4 + w.size * 4
    y_bytes = N * Cout * L_padT * 4

    # -------- pass 1: conv (stored) + per-tile (sum, sum_sq) per channel ------
    def conv_stats_kernel(x_ref, w_ref, y_ref, stats_ref):
        acc = jnp.dot(w_ref[0], x_ref[0, 0],
                      preferred_element_type=jnp.float32)           # (Cout, TL)
        for k in range(1, K):
            acc = acc + jnp.dot(w_ref[k], x_ref[k, 0],
                                preferred_element_type=jnp.float32)
        y_ref[0] = acc                                   # lane-dense store (NCL)
        if need_mask:
            j = pl.program_id(1)
            col = j * TL + jax.lax.broadcasted_iota(jnp.int32, (Cout, TL), 1)
            acc = jnp.where(col < L_out, acc, 0.0)       # exclude padded columns
        s1 = jnp.sum(acc, axis=1, keepdims=True)                    # (Cout, 1)
        s2 = jnp.sum(acc * acc, axis=1, keepdims=True)              # (Cout, 1)
        stats_ref[0, 0] = jnp.concatenate([s1, s2], axis=1)         # (Cout, 2)

    conv_y, stats = pl.pallas_call(
        conv_stats_kernel,
        out_shape=(jax.ShapeDtypeStruct((N, Cout, L_padT), jnp.float32),
                   jax.ShapeDtypeStruct((N, nT, Cout, 2), jnp.float32)),
        grid=(N, nT),
        in_specs=[x_spec, w_spec],
        out_specs=(pl.BlockSpec((1, Cout, TL), lambda n, j: (n, 0, j)),
                   pl.BlockSpec((1, 1, Cout, 2), lambda n, j: (n, j, 0, 0))),
        compiler_params=pltpu.CompilerParams(
            dimension_semantics=("parallel", "parallel")),
        cost_estimate=pl.CostEstimate(
            flops=conv_flops + 3 * N * Cout * L_padT, transcendentals=0,
            bytes_accessed=in_bytes + y_bytes + N * nT * Cout * 2 * 4),
    )(x_shifts, w)

    # -------- finalize BN stats (tiny, plain JAX between the calls) -----------
    M = N * L_out
    s1 = jnp.sum(stats[..., 0], axis=(0, 1))                        # (Cout,)
    s2 = jnp.sum(stats[..., 1], axis=(0, 1))
    mean = s1 / M
    var = jnp.maximum(s2 / M - mean * mean, 0.0)      # guard cancellation
    scale = bn_gamma * jax.lax.rsqrt(var + EPS)
    shift = bn_beta - mean * scale
    ss = jnp.stack([scale, shift], axis=0).reshape(2, Cout, 1)

    # -------- pass 2: elementwise folded BN affine + ReLU (in place) ----------
    def bn_relu_kernel(y_ref, ss_ref, out_ref):
        out_ref[0] = jnp.maximum(y_ref[0] * ss_ref[0] + ss_ref[1],
                                 0.0).astype(out_ref.dtype)

    out = pl.pallas_call(
        bn_relu_kernel,
        out_shape=jax.ShapeDtypeStruct((N, Cout, L_padT), jnp.float32),
        grid=(N, nT),
        in_specs=[pl.BlockSpec((1, Cout, TL), lambda n, j: (n, 0, j)),
                  pl.BlockSpec((2, Cout, 1), lambda n, j: (0, 0, 0))],
        out_specs=pl.BlockSpec((1, Cout, TL), lambda n, j: (n, 0, j)),
        input_output_aliases={0: 0},                     # rewrite conv_y in place
        compiler_params=pltpu.CompilerParams(
            dimension_semantics=("parallel", "parallel")),
        cost_estimate=pl.CostEstimate(
            flops=2 * N * Cout * L_padT, transcendentals=0,
            bytes_accessed=3 * y_bytes),
    )(conv_y, ss)

    return out[:, :, :L_out]


conv_block_jit = jax.jit(
    conv_block, static_argnames=("kernel_size", "dilation", "stride"))


def _reference(x, conv_w, conv_b, bn_gamma, bn_beta, dilation, stride, pad):
    """Pure-JAX reference (Conv1d with bias + training-mode BN + ReLU)."""
    y = jax.lax.conv_general_dilated(
        x, conv_w,
        window_strides=(stride,),
        padding=[(pad, pad)],
        rhs_dilation=(dilation,),
        dimension_numbers=("NCH", "OIH", "NCH"),
    ) + conv_b[None, :, None]
    mean = jnp.mean(y, axis=(0, 2), keepdims=True)
    var = jnp.mean((y - mean) ** 2, axis=(0, 2), keepdims=True)
    y = (y - mean) * jax.lax.rsqrt(var + EPS)
    y = y * bn_gamma[None, :, None] + bn_beta[None, :, None]
    return jnp.maximum(y, 0.0)


if __name__ == "__main__":
    # Module hyper-params (small, consistent with ConvBlock.__init__).
    kernel_size, in_channels, out_channels = 3, 4, 8
    dilation, stride = 1, 1
    N, L = 2, 16
    pad = dilation * (kernel_size - 1) // 2

    key = jax.random.PRNGKey(0)
    kx, kw, kb = jax.random.split(key, 3)

    x = jax.random.normal(kx, (N, in_channels, L), dtype=jnp.float32)

    # Kaiming-uniform-like conv init; PyTorch BatchNorm defaults gamma=1, beta=0.
    fan_in = in_channels * kernel_size
    bound = 1.0 / np.sqrt(fan_in)
    conv_w = jax.random.uniform(kw, (out_channels, in_channels, kernel_size),
                                minval=-bound, maxval=bound, dtype=jnp.float32)
    conv_b = jax.random.uniform(kb, (out_channels,),
                                minval=-bound, maxval=bound, dtype=jnp.float32)
    bn_gamma = jnp.ones((out_channels,), jnp.float32)
    bn_beta = jnp.zeros((out_channels,), jnp.float32)

    y = conv_block_jit(x, conv_w, conv_b, bn_gamma, bn_beta,
                       kernel_size=kernel_size, dilation=dilation, stride=stride)
    y = jax.block_until_ready(y)

    y_ref = _reference(x, conv_w, conv_b, bn_gamma, bn_beta,
                       dilation, stride, pad)
    assert y.shape == y_ref.shape
    np.testing.assert_allclose(np.asarray(y), np.asarray(y_ref),
                               rtol=1e-4, atol=1e-4)

    print("KERNEL_OK")
</pallas_src>

<mosaic_0001>
module attributes {stable_mosaic.version = 11 : i64} {
  func.func @conv_stats_kernel(%arg0: i32, %arg1: i32, %arg2: memref<3x1x4x16xf32, #tpu.memory_space<vmem>>, %arg3: memref<3x8x4xf32, #tpu.memory_space<vmem>>, %arg4: memref<1x8x16xf32, #tpu.memory_space<vmem>>, %arg5: memref<1x1x8x2xf32, #tpu.memory_space<vmem>>) attributes {dimension_semantics = [#tpu.dimension_semantics<parallel>, #tpu.dimension_semantics<parallel>], iteration_bounds = array<i64: 2, 1>, scalar_prefetch = 0 : i64, scratch_operands = 0 : i64, tpu.core_type = #tpu.core_type<tc>, window_params = [{transform_indices = @transform_0, window_bounds = array<i64: 3, 1, 4, 16>}, {pipeline_mode = #tpu.pipeline_mode<synchronous>, transform_indices = @transform_1, window_bounds = array<i64: 3, 8, 4>}, {transform_indices = @transform_2, window_bounds = array<i64: 1, 8, 16>}, {transform_indices = @transform_3, window_bounds = array<i64: 1, 1, 8, 2>}]} {
    %c0 = arith.constant 0 : index
    %c0_0 = arith.constant 0 : index
    %c0_1 = arith.constant 0 : index
    %0 = vector.load %arg3[%c0, %c0_0, %c0_1] : memref<3x8x4xf32, #tpu.memory_space<vmem>>, vector<1x8x4xf32>
    %1 = vector.shape_cast %0 : vector<1x8x4xf32> to vector<8x4xf32>
    %c0_2 = arith.constant 0 : index
    %c0_3 = arith.constant 0 : index
    %c0_4 = arith.constant 0 : index
    %c0_5 = arith.constant 0 : index
    %2 = vector.load %arg2[%c0_2, %c0_3, %c0_4, %c0_5] : memref<3x1x4x16xf32, #tpu.memory_space<vmem>>, vector<1x1x4x16xf32>
    %3 = vector.shape_cast %2 : vector<1x1x4x16xf32> to vector<4x16xf32>
    %cst = arith.constant dense<0.000000e+00> : vector<8x16xf32>
    %4 = tpu.matmul %1, %3, %cst {dimension_numbers = #tpu.dot_dimension_numbers<[1], [0], [0], [1], [0, 0, 1, 1], [], []>} : vector<8x4xf32>, vector<4x16xf32>, vector<8x16xf32> -> vector<8x16xf32>
    %c1 = arith.constant 1 : index
    %c0_6 = arith.constant 0 : index
    %c0_7 = arith.constant 0 : index
    %5 = vector.load %arg3[%c1, %c0_6, %c0_7] : memref<3x8x4xf32, #tpu.memory_space<vmem>>, vector<1x8x4xf32>
    %6 = vector.shape_cast %5 : vector<1x8x4xf32> to vector<8x4xf32>
    %c1_8 = arith.constant 1 : index
    %c0_9 = arith.constant 0 : index
    %c0_10 = arith.constant 0 : index
    %c0_11 = arith.constant 0 : index
    %7 = vector.load %arg2[%c1_8, %c0_9, %c0_10, %c0_11] : memref<3x1x4x16xf32, #tpu.memory_space<vmem>>, vector<1x1x4x16xf32>
    %8 = vector.shape_cast %7 : vector<1x1x4x16xf32> to vector<4x16xf32>
    %cst_12 = arith.constant dense<0.000000e+00> : vector<8x16xf32>
    %9 = tpu.matmul %6, %8, %cst_12 {dimension_numbers = #tpu.dot_dimension_numbers<[1], [0], [0], [1], [0, 0, 1, 1], [], []>} : vector<8x4xf32>, vector<4x16xf32>, vector<8x16xf32> -> vector<8x16xf32>
    %10 = arith.addf %4, %9 : vector<8x16xf32>
    %c2 = arith.constant 2 : index
    %c0_13 = arith.constant 0 : index
    %c0_14 = arith.constant 0 : index
    %11 = vector.load %arg3[%c2, %c0_13, %c0_14] : memref<3x8x4xf32, #tpu.memory_space<vmem>>, vector<1x8x4xf32>
    %12 = vector.shape_cast %11 : vector<1x8x4xf32> to vector<8x4xf32>
    %c2_15 = arith.constant 2 : index
    %c0_16 = arith.constant 0 : index
    %c0_17 = arith.constant 0 : index
    %c0_18 = arith.constant 0 : index
    %13 = vector.load %arg2[%c2_15, %c0_16, %c0_17, %c0_18] : memref<3x1x4x16xf32, #tpu.memory_space<vmem>>, vector<1x1x4x16xf32>
    %14 = vector.shape_cast %13 : vector<1x1x4x16xf32> to vector<4x16xf32>
    %cst_19 = arith.constant dense<0.000000e+00> : vector<8x16xf32>
    %15 = tpu.matmul %12, %14, %cst_19 {dimension_numbers = #tpu.dot_dimension_numbers<[1], [0], [0], [1], [0, 0, 1, 1], [], []>} : vector<8x4xf32>, vector<4x16xf32>, vector<8x16xf32> -> vector<8x16xf32>
    %16 = arith.addf %10, %15 : vector<8x16xf32>
    %c0_20 = arith.constant 0 : index
    %c0_21 = arith.constant 0 : index
    %c0_22 = arith.constant 0 : index
    %17 = vector.load %arg4[%c0_20, %c0_21, %c0_22] : memref<1x8x16xf32, #tpu.memory_space<vmem>>, vector<1x8x16xf32>
    %18 = vector.shape_cast %17 : vector<1x8x16xf32> to vector<8x16xf32>
    %19 = vector.shape_cast %16 : vector<8x16xf32> to vector<1x8x16xf32>
    tpu.vector_store %arg4[%c0_20, %c0_21, %c0_22], %19 {strides = array<i32>} : memref<1x8x16xf32, #tpu.memory_space<vmem>>, vector<1x8x16xf32>,
    %cst_23 = arith.constant dense<0.000000e+00> : vector<8xf32>
    %20 = vector.multi_reduction <add>, %16, %cst_23 [1] : vector<8x16xf32> to vector<8xf32>
    %21 = vector.shape_cast %20 : vector<8xf32> to vector<8x1xf32>
    %22 = arith.mulf %16, %16 : vector<8x16xf32>
    %cst_24 = arith.constant dense<0.000000e+00> : vector<8xf32>
    %23 = vector.multi_reduction <add>, %22, %cst_24 [1] : vector<8x16xf32> to vector<8xf32>
    %24 = vector.shape_cast %23 : vector<8xf32> to vector<8x1xf32>
    %25 = tpu.concatenate %21, %24 in 1 : vector<8x1xf32>, vector<8x1xf32> -> vector<8x2xf32>
    %c0_25 = arith.constant 0 : index
    %c0_26 = arith.constant 0 : index
    %c0_27 = arith.constant 0 : index
    %c0_28 = arith.constant 0 : index
    %26 = vector.load %arg5[%c0_25, %c0_26, %c0_27, %c0_28] : memref<1x1x8x2xf32, #tpu.memory_space<vmem>>, vector<1x1x8x2xf32>
    %27 = vector.shape_cast %26 : vector<1x1x8x2xf32> to vector<8x2xf32>
    %28 = vector.shape_cast %25 : vector<8x2xf32> to vector<1x1x8x2xf32>
    tpu.vector_store %arg5[%c0_25, %c0_26, %c0_27, %c0_28], %28 {strides = array<i32>} : memref<1x1x8x2xf32, #tpu.memory_space<vmem>>, vector<1x1x8x2xf32>,
    return
  }
  func.func @transform_0(%arg0: i32, %arg1: i32) -> (i32, i32, i32, i32) {
    %c0_i32 = arith.constant 0 : i32
    %c0_i32_0 = arith.constant 0 : i32
    %c0_i32_1 = arith.constant 0 : i32
    return %c0_i32, %arg0, %c0_i32_0, %arg1 : i32, i32, i32, i32
  }
  func.func @transform_1(%arg0: i32, %arg1: i32) -> (i32, i32, i32) {
    %c0_i32 = arith.constant 0 : i32
    %c0_i32_0 = arith.constant 0 : i32
    %c0_i32_1 = arith.constant 0 : i32
    %c0_i32_2 = arith.constant 0 : i32
    return %c0_i32, %c0_i32_0, %c0_i32_1 : i32, i32, i32
  }
  func.func @transform_2(%arg0: i32, %arg1: i32) -> (i32, i32, i32) {
    %c0_i32 = arith.constant 0 : i32
    %c0_i32_0 = arith.constant 0 : i32
    return %arg0, %c0_i32, %arg1 : i32, i32, i32
  }
  func.func @transform_3(%arg0: i32, %arg1: i32) -> (i32, i32, i32, i32) {
    %c0_i32 = arith.constant 0 : i32
    %c0_i32_0 = arith.constant 0 : i32
    %c0_i32_1 = arith.constant 0 : i32
    return %arg0, %arg1, %c0_i32, %c0_i32_0 : i32, i32, i32, i32
  }
}

module attributes {stable_mosaic.version = 11 : i64} {
  func.func @bn_relu_kernel(%arg0: i32, %arg1: i32, %arg2: memref<1x8x16xf32, #tpu.memory_space<vmem>>, %arg3: memref<2x8x1xf32, #tpu.memory_space<vmem>>, %arg4: memref<1x8x16xf32, #tpu.memory_space<vmem>>) attributes {dimension_semantics = [#tpu.dimension_semantics<parallel>, #tpu.dimension_semantics<parallel>], iteration_bounds = array<i64: 2, 1>, scalar_prefetch = 0 : i64, scratch_operands = 0 : i64, tpu.core_type = #tpu.core_type<tc>, window_params = [{transform_indices = @transform_0, window_bounds = array<i64: 1, 8, 16>}, {pipeline_mode = #tpu.pipeline_mode<synchronous>, transform_indices = @transform_1, window_bounds = array<i64: 2, 8, 1>}, {transform_indices = @transform_2, window_bounds = array<i64: 1, 8, 16>}]} {
    %c0 = arith.constant 0 : index
    %c0_0 = arith.constant 0 : index
    %c0_1 = arith.constant 0 : index
    %0 = vector.load %arg2[%c0, %c0_0, %c0_1] : memref<1x8x16xf32, #tpu.memory_space<vmem>>, vector<1x8x16xf32>
    %1 = vector.shape_cast %0 : vector<1x8x16xf32> to vector<8x16xf32>
    %c0_2 = arith.constant 0 : index
    %c0_3 = arith.constant 0 : index
    %c0_4 = arith.constant 0 : index
    %2 = vector.load %arg3[%c0_2, %c0_3, %c0_4] : memref<2x8x1xf32, #tpu.memory_space<vmem>>, vector<1x8x1xf32>
    %3 = vector.shape_cast %2 : vector<1x8x1xf32> to vector<8x1xf32>
    %4 = vector.broadcast %3 : vector<8x1xf32> to vector<8x16xf32>
    %5 = arith.mulf %1, %4 : vector<8x16xf32>
    %c1 = arith.constant 1 : index
    %c0_5 = arith.constant 0 : index
    %c0_6 = arith.constant 0 : index
    %6 = vector.load %arg3[%c1, %c0_5, %c0_6] : memref<2x8x1xf32, #tpu.memory_space<vmem>>, vector<1x8x1xf32>
    %7 = vector.shape_cast %6 : vector<1x8x1xf32> to vector<8x1xf32>
    %8 = vector.broadcast %7 : vector<8x1xf32> to vector<8x16xf32>
    %9 = arith.addf %5, %8 : vector<8x16xf32>
    %cst = arith.constant 0.000000e+00 : f32
    %10 = vector.broadcast %cst : f32 to vector<8x16xf32>
    %11 = arith.maximumf %9, %10 : vector<8x16xf32>
    %c0_7 = arith.constant 0 : index
    %c0_8 = arith.constant 0 : index
    %c0_9 = arith.constant 0 : index
    %12 = vector.load %arg4[%c0_7, %c0_8, %c0_9] : memref<1x8x16xf32, #tpu.memory_space<vmem>>, vector<1x8x16xf32>
    %13 = vector.shape_cast %12 : vector<1x8x16xf32> to vector<8x16xf32>
    %14 = vector.shape_cast %11 : vector<8x16xf32> to vector<1x8x16xf32>
    tpu.vector_store %arg4[%c0_7, %c0_8, %c0_9], %14 {strides = array<i32>} : memref<1x8x16xf32, #tpu.memory_space<vmem>>, vector<1x8x16xf32>,
    return
  }
  func.func @transform_0(%arg0: i32, %arg1: i32) -> (i32, i32, i32) {
    %c0_i32 = arith.constant 0 : i32
    %c0_i32_0 = arith.constant 0 : i32
    return %arg0, %c0_i32, %arg1 : i32, i32, i32
  }
  func.func @transform_1(%arg0: i32, %arg1: i32) -> (i32, i32, i32) {
    %c0_i32 = arith.constant 0 : i32
    %c0_i32_0 = arith.constant 0 : i32
    %c0_i32_1 = arith.constant 0 : i32
    %c0_i32_2 = arith.constant 0 : i32
    return %c0_i32, %c0_i32_0, %c0_i32_1 : i32, i32, i32
  }
  func.func @transform_2(%arg0: i32, %arg1: i32) -> (i32, i32, i32) {
    %c0_i32 = arith.constant 0 : i32
    %c0_i32_0 = arith.constant 0 : i32
    return %arg0, %c0_i32, %arg1 : i32, i32, i32
  }
}

</mosaic_0001>

<llo_original>
// kernel: conv_block.2
$region0: #{conv_block.2}
  #allocation0 [shape = 'u32[]', space=smem, size = 0x4, offset = 0x4, fixed_abs, tag = 'smem constant byte address 0x4 - core index']
  #allocation1 [shape = 'u32[144,128]{1,0:T(1,128)}', space=vmem, size = 0x12000, scoped, tag = 'internal scratch']
  %s0 = inlined_call_operand.vmem [shape: f32[3,2,4,16], index: 0, kind: input, shape index: {}]
  %s1 = inlined_call_operand.vmem [shape: f32[3,8,4], index: 1, kind: input, shape index: {}]
  %s2 = inlined_call_operand.hbm [shape: f32[2,8,16], index: 2, kind: output, shape index: {0}]
  %s3 = inlined_call_operand.vmem [shape: f32[2,1,8,2], index: 3, kind: output, shape index: {1}]
  %4 = xla_tuple %s2, %s3
  %s5 = sld [smem:[#allocation0]]
  $region90: #{conv_block.2} parent=0
    _
  %s7 = ssub.s32 1, %s5
  %s8 = scalar_select 0, %s7, %s5
  $region1: #{conv_block.2} parent=0
    #allocation2 [shape = 'u8[12288]{0}', space=vmem, size = 0x3000, scoped, tag = 'input window, operand 0']
    #allocation3 [shape = 'u8[8192]{0}', space=vmem, size = 0x2000, scoped, tag = 'output window, operand 0']
    #allocation4 [shape = 's32[2]{0}', space=sflag, size = 0x8, scoped, tag = 'scoped memory for conv_block.2']
    %9 = vsyncpa [#allocation4], 0
    %s10 = scalar_lea.sflag [#allocation4], 1
    %11 = vsyncpa %s10, 0
    loop: start=0, step=1, limit=4
    $region2: #{conv_block.2} parent=1 // loop_pre_header
      _
    $region3: #{conv_block.2} parent=1 // loop_header
      %s13 = sphi 0, %s17
      %p14 = scmp.ge.s32.totalorder %s13, 4
      %s20 = sphi 0, %s32
      %s21 = sphi 0, %s28
      %s22 = sphi 0, %s20
      %s23 = sphi 0, %s21
      %s24 = sphi 0, %s22
      %s25 = sphi 0, %s23
      %s37 = sphi 0, %s39
      %s40 = sphi 0, %s37
      %s41 = sphi 0, %s40
      %s57 = sphi 0, %s41
      %s61 = sphi 0, %s61
      %s63 = sphi 0, %s61
      %s64 = sphi 0, %s63
      %s78 = sphi 0, %s64
      %s86 = sphi 0, %s88
      %s89 = sphi 0, %s86
      %s90 = sphi 0, %s89
      %s106 = sphi 0, %s90
      %s114 = sphi 0, %s116
      %s117 = sphi 0, %s114
      %s118 = sphi 0, %s117
      %s134 = sphi 0, %s118
    $region4: #{conv_block.2} parent=1 // loop_header_branch
      %16 = sbr.rel (%p14) target = $region8
    $region5: #{conv_block.2} parent=1 // loop_body
      %s18 = ssub.s32 %s13, 1
      %s19 = ssub.s32 %s13, 2
      %s26 = sadd.s32 1, %s21
      %p27 = scmp.ge.s32.totalorder %s26, 1
      %s28 = scalar_select %p27, 0, %s26
      %s29 = sadd.s32 1, %s20
      %s30 = scalar_select %p27, %s29, %s20
      %p31 = scmp.ge.s32.totalorder %s30, 2
      %s32 = scalar_select %p31, 0, %s30
      %s33 = ssub.s32 %s20, %s32
      %s34 = ssub.s32 %s21, %s28
      %s35 = sor.u32 %s33, %s34
      %p36 = scmp.eq.s32.totalorder %s35, 0
      %s38 = sadd.s32 %s37, 1
      %s39 = scalar_select %p36, %s37, %s38
      %p42 = pneg %p36
      %p43 = scmp.eq.s32.totalorder %s13, 1
      %p44 = por %p42, %p43
      %p45 = scmp.ne.s32.totalorder %s37, %s40
      %p46 = scmp.eq.s32.totalorder %s13, 0
      %p47 = por %p45, %p46
      %p48 = scmp.ne.s32.totalorder %s37, %s40
      %p49 = scmp.eq.s32.totalorder %s18, 1
      %p50 = por %p48, %p49
      %p51 = scmp.ne.s32.totalorder %s40, %s41
      %p52 = scmp.eq.s32.totalorder %s18, 0
      %p53 = por %p51, %p52
      %p54 = scmp.ne.s32.totalorder %s40, %s41
      %p55 = scmp.eq.s32.totalorder %s19, 1
      %p56 = por %p54, %p55
      %p58 = scmp.ne.s32.totalorder %s41, %s57
      %p59 = scmp.eq.s32.totalorder %s19, 0
      %p60 = por %p58, %p59
      %s62 = sadd.s32 %s61, 1
      %p65 = scmp.eq.s32.totalorder %s13, 1
      %p66 = scmp.ne.s32.totalorder %s61, %s63
      %p67 = scmp.eq.s32.totalorder %s13, 0
      %p68 = por %p66, %p67
      %p69 = scmp.ne.s32.totalorder %s61, %s63
      %p70 = scmp.eq.s32.totalorder %s18, 1
      %p71 = por %p69, %p70
      %p72 = scmp.ne.s32.totalorder %s63, %s64
      %p73 = scmp.eq.s32.totalorder %s18, 0
      %p74 = por %p72, %p73
      %p75 = scmp.ne.s32.totalorder %s63, %s64
      %p76 = scmp.eq.s32.totalorder %s19, 1
      %p77 = por %p75, %p76
      %p79 = scmp.ne.s32.totalorder %s64, %s78
      %p80 = scmp.eq.s32.totalorder %s19, 0
      %p81 = por %p79, %p80
      %s82 = ssub.s32 %s20, %s32
      %s83 = ssub.s32 %s21, %s28
      %s84 = sor.u32 %s82, %s83
      %p85 = scmp.eq.s32.totalorder %s84, 0
      %s87 = sadd.s32 %s86, 1
      %s88 = scalar_select %p85, %s86, %s87
      %p91 = pneg %p85
      %p92 = scmp.eq.s32.totalorder %s13, 1
      %p93 = por %p91, %p92
      %p94 = scmp.ne.s32.totalorder %s86, %s89
      %p95 = scmp.eq.s32.totalorder %s13, 0
      %p96 = por %p94, %p95
      %p97 = scmp.ne.s32.totalorder %s86, %s89
      %p98 = scmp.eq.s32.totalorder %s18, 1
      %p99 = por %p97, %p98
      %p100 = scmp.ne.s32.totalorder %s89, %s90
      %p101 = scmp.eq.s32.totalorder %s18, 0
      %p102 = por %p100, %p101
      %p103 = scmp.ne.s32.totalorder %s89, %s90
      %p104 = scmp.eq.s32.totalorder %s19, 1
      %p105 = por %p103, %p104
      %p107 = scmp.ne.s32.totalorder %s90, %s106
      %p108 = scmp.eq.s32.totalorder %s19, 0
      %p109 = por %p107, %p108
      %s110 = ssub.s32 %s20, %s32
      %s111 = ssub.s32 %s21, %s28
      %s112 = sor.u32 %s110, %s111
      %p113 = scmp.eq.s32.totalorder %s112, 0
      %s115 = sadd.s32 %s114, 1
      %s116 = scalar_select %p113, %s114, %s115
      %p119 = pneg %p113
      %p120 = scmp.eq.s32.totalorder %s13, 1
      %p121 = por %p119, %p120
      %p122 = scmp.ne.s32.totalorder %s114, %s117
      %p123 = scmp.eq.s32.totalorder %s13, 0
      %p124 = por %p122, %p123
      %p125 = scmp.ne.s32.totalorder %s114, %s117
      %p126 = scmp.eq.s32.totalorder %s18, 1
      %p127 = por %p125, %p126
      %p128 = scmp.ne.s32.totalorder %s117, %s118
      %p129 = scmp.eq.s32.totalorder %s18, 0
      %p130 = por %p128, %p129
      %p131 = scmp.ne.s32.totalorder %s117, %s118
      %p132 = scmp.eq.s32.totalorder %s19, 1
      %p133 = por %p131, %p132
      %p135 = scmp.ne.s32.totalorder %s118, %s134
      %p136 = scmp.eq.s32.totalorder %s19, 0
      %p137 = por %p135, %p136
      %p138 = scmp.le.s32.totalorder 1, %s13
      %p139 = scmp.lt.s32.totalorder %s13, 3
      %p140 = pnand %p138, %p139
      %p141 = pneg %p140
      // Predicated region
      $region9: #{conv_block.2} parent=5 // pred_check
        _
      $region10: #{conv_block.2} parent=5 // pred_check_branch
        %143 = sbr.rel (%p140) target = $region12
      $region11: #{conv_block.2} parent=5 // pred_region
        %s144 = ssub.s32 %s13, 1
        // Predicated region
        $region13: #{conv_block.2} parent=11 // pred_check
          %p145 = pneg %p74
        $region14: #{conv_block.2} parent=11 // pred_check_branch
          %147 = sbr.rel (%p145) target = $region16
        $region15: #{conv_block.2} parent=11 // pred_region
          _
        $region16: #{conv_block.2} parent=11 // pred_fallthru
          _
      $region12: #{conv_block.2} parent=5 // pred_fallthru
        _
      %p148 = scmp.lt.s32.totalorder %s13, 2
      // Predicated region
      $region17: #{conv_block.2} parent=5 // pred_check
        %p149 = pneg %p148
      $region18: #{conv_block.2} parent=5 // pred_check_branch
        %151 = sbr.rel (%p149) target = $region20
      $region19: #{conv_block.2} parent=5 // pred_region
        // Predicated region
        $region21: #{conv_block.2} parent=19 // pred_check
          %p152 = pneg %p47
        $region22: #{conv_block.2} parent=19 // pred_check_branch
          %154 = sbr.rel (%p152) target = $region24
        $region23: #{conv_block.2} parent=19 // pred_region
          %s155 = sand.u32 %s37, 1
          %s156 = sand.u32 %s37, 1
          %s157 = smul.addr %s156, 12
          %s158 = scalar_lea.vmem [#allocation2], %s157
          %s159 = sadd.s32 %s21, %s20
          %s160 = smul.addr %s159, 4
          %s161 = scalar_lea.vmem %s0, %s160
          // Predicated region
          $region25: #{conv_block.2} parent=23 // pred_check
            _
          $region26: #{conv_block.2} parent=23 // pred_check_branch
            %163 = sbr.rel (0) target = $region28
          $region27: #{conv_block.2} parent=23 // pred_region
            // Predicated region
            $region29: #{conv_block.2} parent=27 // pred_check
              _
            $region30: #{conv_block.2} parent=27 // pred_check_branch
              %165 = sbr.rel target = $region32
            $region31: #{conv_block.2} parent=27 // pred_region
              // Predicated region
              $region44: #{conv_block.2} parent=31 // pred_check
                _
              $region45: #{conv_block.2} parent=31 // pred_check_branch
                %184 = sbr.rel (0) target = $region47
              $region46: #{conv_block.2} parent=31 // pred_region
                loop: start=0, step=1, limit=1
                $region48: #{conv_block.2} parent=46 // loop_pre_header
                  _
                $region49: #{conv_block.2} parent=46 // loop_header
                  %s186 = sphi 0, %s190
                  %p187 = scmp.ge.s32.totalorder %s186, 1
                  %s191 = sphi %s161, %s161
                  %s192 = sphi %s158, %s158
                $region50: #{conv_block.2} parent=46 // loop_header_branch
                  %189 = sbr.rel (%p187) target = $region54
                $region51: #{conv_block.2} parent=46 // loop_body
                  _
                $region52: #{conv_block.2} parent=46 // loop_footer
                  %s190 = sadd.s32 1, %s186
                $region53: #{conv_block.2} parent=46 // loop_footer_branch
                  %185 = sbr.rel target = $region49
                $region54: #{conv_block.2} parent=46 // loop_exit
                  _
                loop: start=0, step=1, limit=1
                $region55: #{conv_block.2} parent=46 // loop_pre_header
                  _
                $region56: #{conv_block.2} parent=46 // loop_header
                  %s195 = sphi 0, %s199
                  %p196 = scmp.ge.s32.totalorder %s195, 1
                  %s200 = sphi %s161, %s161
                  %s201 = sphi %s158, %s158
                $region57: #{conv_block.2} parent=46 // loop_header_branch
                  %198 = sbr.rel (%p196) target = $region61
                $region58: #{conv_block.2} parent=46 // loop_body
                  %v202 = vld [vmem:[%s200] sm:$0xf]
                  %203 = vst [vmem:[%s201] sm:$0xf] %v202
                  %v204 = vld [vmem:[%s200 + $0x8] sm:$0xf]
                  %205 = vst [vmem:[%s201 + $0x4] sm:$0xf] %v204
                  %v206 = vld [vmem:[%s200 + $0x10] sm:$0xf]
                  %207 = vst [vmem:[%s201 + $0x8] sm:$0xf] %v206
                $region59: #{conv_block.2} parent=46 // loop_footer
                  %s199 = sadd.s32 1, %s195
                $region60: #{conv_block.2} parent=46 // loop_footer_branch
                  %194 = sbr.rel target = $region56
                $region61: #{conv_block.2} parent=46 // loop_exit
                  _
              $region47: #{conv_block.2} parent=31 // pred_fallthru
                _
            $region32: #{conv_block.2} parent=27 // pred_fallthru
              _
            // Predicated region
            $region33: #{conv_block.2} parent=27 // pred_check
              _
            $region34: #{conv_block.2} parent=27 // pred_check_branch
              %167 = sbr.rel (0) target = $region36
            $region35: #{conv_block.2} parent=27 // pred_region
              loop: start=0, step=1, limit=1
              $region37: #{conv_block.2} parent=35 // loop_pre_header
                _
              $region38: #{conv_block.2} parent=35 // loop_header
                %s170 = sphi 0, %s174
                %p171 = scmp.ge.s32.totalorder %s170, 1
                %s175 = sphi %s161, %s161
                %s176 = sphi %s158, %s158
              $region39: #{conv_block.2} parent=35 // loop_header_branch
                %173 = sbr.rel (%p171) target = $region43
              $region40: #{conv_block.2} parent=35 // loop_body
                %v177 = vld [vmem:[%s175] sm:$0xf]
                %178 = vst [vmem:[%s176] sm:$0xf] %v177
                %v179 = vld [vmem:[%s175 + $0x8] sm:$0xf]
                %180 = vst [vmem:[%s176 + $0x4] sm:$0xf] %v179
                %v181 = vld [vmem:[%s175 + $0x10] sm:$0xf]
                %182 = vst [vmem:[%s176 + $0x8] sm:$0xf] %v181
              $region41: #{conv_block.2} parent=35 // loop_footer
                %s174 = sadd.s32 1, %s170
              $region42: #{conv_block.2} parent=35 // loop_footer_branch
                %169 = sbr.rel target = $region38
              $region43: #{conv_block.2} parent=35 // loop_exit
                _
            $region36: #{conv_block.2} parent=27 // pred_fallthru
              _
          $region28: #{conv_block.2} parent=23 // pred_fallthru
            _
          %208 = vnop
        $region24: #{conv_block.2} parent=19 // pred_fallthru
          _
      $region20: #{conv_block.2} parent=5 // pred_fallthru
        _
      %p209 = scmp.le.s32.totalorder 1, %s13
      %p210 = scmp.lt.s32.totalorder %s13, 3
      %p211 = pnand %p209, %p210
      %p212 = pneg %p211
      // Predicated region
      $region62: #{conv_block.2} parent=5 // pred_check
        _
      $region63: #{conv_block.2} parent=5 // pred_check_branch
        %214 = sbr.rel (%p211) target = $region65
      $region64: #{conv_block.2} parent=5 // pred_region
        %s215 = ssub.s32 %s13, 1
        %s216 = sand.u32 %s40, 1
        %s217 = sand.u32 %s40, 1
        %s218 = smul.addr %s217, 12
        %s219 = scalar_lea.vmem [#allocation2], %s218
        // Predicated region
        $region66: #{conv_block.2} parent=64 // pred_check
          %p220 = pneg %p53
        $region67: #{conv_block.2} parent=64 // pred_check_branch
          %222 = sbr.rel (%p220) target = $region69
        $region68: #{conv_block.2} parent=64 // pred_region
          _
        $region69: #{conv_block.2} parent=64 // pred_fallthru
          _
        %s223 = sand.u32 %s40, 1
        %s224 = sand.u32 %s40, 1
        %s225 = smul.addr %s224, 12
        %s226 = scalar_lea.vmem [#allocation2], %s225
        %p227 = pneg %p53
        %p228 = pneg %p50
        %p229 = pneg %p74
        %p230 = pneg %p71
        %p231 = pneg %p102
        %p232 = pneg %p99
        %s233 = sand.u32 %s89, 1
        %s234 = scalar_lea.sflag [#allocation4], %s233
        %s235 = sand.u32 %s89, 1
        %s236 = smul.addr %s235, 8
        %s237 = scalar_lea.vmem [#allocation3], %s236
        %p238 = pneg %p130
        %p239 = pneg %p127
        %p240 = scmp.lt.s32.totalorder %s22, 1
        %s241 = scalar_select %p240, %s22, 1
        %p242 = scmp.lt.s32.totalorder %s23, 0
        %s243 = scalar_select %p242, %s23, 0
        %s244 = sadd.s32 %s243, %s241
        %s245 = smul.addr %s244, 8
        %s246 = scalar_lea.vmem %s3, %s245
        %p247 = scmp.lt.s32.totalorder %s22, 1
        %s248 = scalar_select %p247, %s22, 1
        %p249 = scmp.lt.s32.totalorder %s23, 0
        %s250 = scalar_select %p249, %s23, 0
        %s251 = sadd.s32 %s250, %s248
        %s252 = smul.addr %s251, 8
        %s253 = scalar_lea.vmem %s3, %s252
        %v254 = vld [vmem:[%s1] sm:$0xff]
        %v255 = vld [vmem:[%s219] sm:$0xf]
        %s256 = scalar_lea.vmem %s1, 8
        %v257 = vld [vmem:[%s256] sm:$0xff]
        %s258 = scalar_lea.vmem %s219, 4 [#allocation2]
        %v259 = vld [vmem:[%s258] sm:$0xf]
        %vm260 = vcmask 31744
        %v262 = vsel %vm260, %v257, 0
        %vm264 = vcmask 1043456
        %v266 = vsel %vm264, %v259, 0
        %268 = vmatprep.subr.mxu0 0.0
        %269 = vmatpush1.msra.mxu0 %v266
        %270 = vmatprep.subr.mxu0 0.0
        %271 = vmatpush1.msra.mxu0 0.0
        %272 = vmatprep.subr.mxu0 0.0
        %273 = vmatpush1.msra.mxu0 0.0
        %274 = vmatprep.subr.mxu0 0.0
        %275 = vmatpush1.msra.mxu0 0.0
        %276 = vmatprep.subr.mxu0 0.0
        %277 = vmatpush1.msra.mxu0 0.0
        %278 = vmatprep.subr.mxu0 0.0
        %279 = vmatpush1.msra.mxu0 0.0
        %280 = vmatprep.subr.mxu0 0.0
        %281 = vmatpush1.msra.mxu0 0.0
        %282 = vmatprep.subr.mxu0 0.0
        %283 = vmatpush1.msra.mxu0 0.0
        %284 = vmatprep.subr.mxu0 0.0
        %285 = vmatpush1.msra.mxu0 0.0
        %286 = vmatprep.subr.mxu0 0.0
        %287 = vmatpush1.msra.mxu0 0.0
        %288 = vmatprep.subr.mxu0 0.0
        %289 = vmatpush1.msra.mxu0 0.0
        %290 = vmatprep.subr.mxu0 0.0
        %291 = vmatpush1.msra.mxu0 0.0
        %292 = vmatprep.subr.mxu0 0.0
        %293 = vmatpush1.msra.mxu0 0.0
        %294 = vmatprep.subr.mxu0 0.0
        %295 = vmatpush1.msra.mxu0 0.0
        %296 = vmatprep.subr.mxu0 0.0
        %297 = vmatpush1.msra.mxu0 0.0
        %298 = vmatprep.subr.mxu0 0.0
        %299 = vmatpush1.msra.mxu0 0.0
        %300 = vmatprep.subr.mxu0 0.0
        %301 = vmatpush1.msra.mxu0 0.0
        %302 = vmatprep.subr.mxu0 0.0
        %303 = vmatpush1.msra.mxu0 0.0
        %304 = vmatprep.subr.mxu0 0.0
        %305 = vmatpush1.msra.mxu0 0.0
        %306 = vmatprep.subr.mxu0 0.0
        %307 = vmatpush1.msra.mxu0 0.0
        %308 = vmatprep.subr.mxu0 0.0
        %309 = vmatpush1.msra.mxu0 0.0
        %310 = vmatprep.subr.mxu0 0.0
        %311 = vmatpush1.msra.mxu0 0.0
        %312 = vmatprep.subr.mxu0 0.0
        %313 = vmatpush1.msra.mxu0 0.0
        %314 = vmatprep.subr.mxu0 0.0
        %315 = vmatpush1.msra.mxu0 0.0
        %316 = vmatprep.subr.mxu0 0.0
        %317 = vmatpush1.msra.mxu0 0.0
        %318 = vmatprep.subr.mxu0 0.0
        %319 = vmatpush1.msra.mxu0 0.0
        %320 = vmatprep.subr.mxu0 0.0
        %321 = vmatpush1.msra.mxu0 0.0
        %322 = vmatprep.subr.mxu0 0.0
        %323 = vmatpush1.msra.mxu0 0.0
        %324 = vmatprep.subr.mxu0 0.0
        %325 = vmatpush1.msra.mxu0 0.0
        %326 = vmatprep.subr.mxu0 0.0
        %327 = vmatpush1.msra.mxu0 0.0
        %328 = vmatprep.subr.mxu0 0.0
        %329 = vmatpush1.msra.mxu0 0.0
        %330 = vmatprep.subr.mxu0 0.0
        %331 = vmatpush1.msra.mxu0 0.0
        %332 = vmatprep.mubr.f32.mxu0 0.0
        %333 = vmatmul.mubr.f32.gmra.mrb[0].mxu0 %v262
        %v334 = vpop.f32.mrb[0].mxu0
        %v335 = vadd.f32 0.0, %v334
        %v336 = vpop.f32.mrb[0].mxu0
        %337 = vdwg.mxu0
        %v339 = vsel %vm260, %v254, 0
        %v342 = vsel %vm264, %v255, 0
        %344 = vmatprep.subr.mxu0 0.0
        %345 = vmatpush1.msra.mxu0 %v342
        %346 = vmatprep.subr.mxu0 0.0
        %347 = vmatpush1.msra.mxu0 0.0
        %348 = vmatprep.subr.mxu0 0.0
        %349 = vmatpush1.msra.mxu0 0.0
        %350 = vmatprep.subr.mxu0 0.0
        %351 = vmatpush1.msra.mxu0 0.0
        %352 = vmatprep.subr.mxu0 0.0
        %353 = vmatpush1.msra.mxu0 0.0
        %354 = vmatprep.subr.mxu0 0.0
        %355 = vmatpush1.msra.mxu0 0.0
        %356 = vmatprep.subr.mxu0 0.0
        %357 = vmatpush1.msra.mxu0 0.0
        %358 = vmatprep.subr.mxu0 0.0
        %359 = vmatpush1.msra.mxu0 0.0
        %360 = vmatprep.subr.mxu0 0.0
        %361 = vmatpush1.msra.mxu0 0.0
        %362 = vmatprep.subr.mxu0 0.0
        %363 = vmatpush1.msra.mxu0 0.0
        %364 = vmatprep.subr.mxu0 0.0
        %365 = vmatpush1.msra.mxu0 0.0
        %366 = vmatprep.subr.mxu0 0.0
        %367 = vmatpush1.msra.mxu0 0.0
        %368 = vmatprep.subr.mxu0 0.0
        %369 = vmatpush1.msra.mxu0 0.0
        %370 = vmatprep.subr.mxu0 0.0
        %371 = vmatpush1.msra.mxu0 0.0
        %372 = vmatprep.subr.mxu0 0.0
        %373 = vmatpush1.msra.mxu0 0.0
        %374 = vmatprep.subr.mxu0 0.0
        %375 = vmatpush1.msra.mxu0 0.0
        %376 = vmatprep.subr.mxu0 0.0
        %377 = vmatpush1.msra.mxu0 0.0
        %378 = vmatprep.subr.mxu0 0.0
        %379 = vmatpush1.msra.mxu0 0.0
        %380 = vmatprep.subr.mxu0 0.0
        %381 = vmatpush1.msra.mxu0 0.0
        %382 = vmatprep.subr.mxu0 0.0
        %383 = vmatpush1.msra.mxu0 0.0
        %384 = vmatprep.subr.mxu0 0.0
        %385 = vmatpush1.msra.mxu0 0.0
        %386 = vmatprep.subr.mxu0 0.0
        %387 = vmatpush1.msra.mxu0 0.0
        %388 = vmatprep.subr.mxu0 0.0
        %389 = vmatpush1.msra.mxu0 0.0
        %390 = vmatprep.subr.mxu0 0.0
        %391 = vmatpush1.msra.mxu0 0.0
        %392 = vmatprep.subr.mxu0 0.0
        %393 = vmatpush1.msra.mxu0 0.0
        %394 = vmatprep.subr.mxu0 0.0
        %395 = vmatpush1.msra.mxu0 0.0
        %396 = vmatprep.subr.mxu0 0.0
        %397 = vmatpush1.msra.mxu0 0.0
        %398 = vmatprep.subr.mxu0 0.0
        %399 = vmatpush1.msra.mxu0 0.0
        %400 = vmatprep.subr.mxu0 0.0
        %401 = vmatpush1.msra.mxu0 0.0
        %402 = vmatprep.subr.mxu0 0.0
        %403 = vmatpush1.msra.mxu0 0.0
        %404 = vmatprep.subr.mxu0 0.0
        %405 = vmatpush1.msra.mxu0 0.0
        %406 = vmatprep.subr.mxu0 0.0
        %407 = vmatpush1.msra.mxu0 0.0
        %408 = vmatprep.mubr.f32.mxu0 0.0
        %409 = vmatmul.mubr.f32.gmra.mrb[0].mxu0 %v339
        %v410 = vpop.f32.mrb[0].mxu0
        %v411 = vadd.f32 %v335, %v410
        %v412 = vpop.f32.mrb[0].mxu0
        %413 = vdwg.mxu0
        %s414 = scalar_lea.vmem %s1, 16
        %v415 = vld [vmem:[%s414] sm:$0xff]
        %s416 = scalar_lea.vmem %s219, 8 [#allocation2]
        %v417 = vld [vmem:[%s416] sm:$0xf]
        %v419 = vsel %vm260, %v415, 0
        %v422 = vsel %vm264, %v417, 0
        %424 = vmatprep.subr.mxu0 0.0
        %425 = vmatpush1.msra.mxu0 %v422
        %426 = vmatprep.subr.mxu0 0.0
        %427 = vmatpush1.msra.mxu0 0.0
        %428 = vmatprep.subr.mxu0 0.0
        %429 = vmatpush1.msra.mxu0 0.0
        %430 = vmatprep.subr.mxu0 0.0
        %431 = vmatpush1.msra.mxu0 0.0
        %432 = vmatprep.subr.mxu0 0.0
        %433 = vmatpush1.msra.mxu0 0.0
        %434 = vmatprep.subr.mxu0 0.0
        %435 = vmatpush1.msra.mxu0 0.0
        %436 = vmatprep.subr.mxu0 0.0
        %437 = vmatpush1.msra.mxu0 0.0
        %438 = vmatprep.subr.mxu0 0.0
        %439 = vmatpush1.msra.mxu0 0.0
        %440 = vmatprep.subr.mxu0 0.0
        %441 = vmatpush1.msra.mxu0 0.0
        %442 = vmatprep.subr.mxu0 0.0
        %443 = vmatpush1.msra.mxu0 0.0
        %444 = vmatprep.subr.mxu0 0.0
        %445 = vmatpush1.msra.mxu0 0.0
        %446 = vmatprep.subr.mxu0 0.0
        %447 = vmatpush1.msra.mxu0 0.0
        %448 = vmatprep.subr.mxu0 0.0
        %449 = vmatpush1.msra.mxu0 0.0
        %450 = vmatprep.subr.mxu0 0.0
        %451 = vmatpush1.msra.mxu0 0.0
        %452 = vmatprep.subr.mxu0 0.0
        %453 = vmatpush1.msra.mxu0 0.0
        %454 = vmatprep.subr.mxu0 0.0
        %455 = vmatpush1.msra.mxu0 0.0
        %456 = vmatprep.subr.mxu0 0.0
        %457 = vmatpush1.msra.mxu0 0.0
        %458 = vmatprep.subr.mxu0 0.0
        %459 = vmatpush1.msra.mxu0 0.0
        %460 = vmatprep.subr.mxu0 0.0
        %461 = vmatpush1.msra.mxu0 0.0
        %462 = vmatprep.subr.mxu0 0.0
        %463 = vmatpush1.msra.mxu0 0.0
        %464 = vmatprep.subr.mxu0 0.0
        %465 = vmatpush1.msra.mxu0 0.0
        %466 = vmatprep.subr.mxu0 0.0
        %467 = vmatpush1.msra.mxu0 0.0
        %468 = vmatprep.subr.mxu0 0.0
        %469 = vmatpush1.msra.mxu0 0.0
        %470 = vmatprep.subr.mxu0 0.0
        %471 = vmatpush1.msra.mxu0 0.0
        %472 = vmatprep.subr.mxu0 0.0
        %473 = vmatpush1.msra.mxu0 0.0
        %474 = vmatprep.subr.mxu0 0.0
        %475 = vmatpush1.msra.mxu0 0.0
        %476 = vmatprep.subr.mxu0 0.0
        %477 = vmatpush1.msra.mxu0 0.0
        %478 = vmatprep.subr.mxu0 0.0
        %479 = vmatpush1.msra.mxu0 0.0
        %480 = vmatprep.subr.mxu0 0.0
        %481 = vmatpush1.msra.mxu0 0.0
        %482 = vmatprep.subr.mxu0 0.0
        %483 = vmatpush1.msra.mxu0 0.0
        %484 = vmatprep.subr.mxu0 0.0
        %485 = vmatpush1.msra.mxu0 0.0
        %486 = vmatprep.subr.mxu0 0.0
        %487 = vmatpush1.msra.mxu0 0.0
        %488 = vmatprep.mubr.f32.mxu0 0.0
        %489 = vmatmul.mubr.f32.gmra.mrb[0].mxu0 %v419
        %v490 = vpop.f32.mrb[0].mxu0
        %v491 = vadd.f32 0.0, %v490
        %v492 = vpop.f32.mrb[0].mxu0
        %493 = vdwg.mxu0
        %v494 = vadd.f32 %v411, %v491
        %vm495 = vcmask 130048
        %496 = vst.msk [vmem:[%s237] sm:$0xff] %vm495, %v494
        %v497 = vsel %vm495, %v494, 0.0
        %498 = vadd.xlane.f32.xlu0 %v497
        %v499 = vpop.xlane.xlu0 %498
        %v500 = vmul.f32 %v494, %v494
        %v501 = vsel %vm495, %v500, 0.0
        %502 = vadd.xlane.f32.xlu0 %v501
        %v503 = vpop.xlane.xlu0 %502
        %vm504 = vcmask 7168
        %v505 = vsel %vm504, %v499, %v503
        %vm506 = vcmask 15360
        %507 = vst.msk [vmem:[%s253] sm:$0xff] %vm506, %v505
        %s508 = sand.u32 %s89, 1
        %s509 = scalar_lea.sflag [#allocation4], %s508
        %s510 = sand.u32 %s89, 1
        %s511 = smul.addr %s510, 8
        %s512 = scalar_lea.vmem [#allocation3], %s511
        %p513 = scmp.lt.s32.totalorder %s22, 1
        %s514 = scalar_select %p513, %s22, 1
        %p515 = scmp.lt.s32.totalorder %s23, 0
        %s516 = scalar_select %p515, %s23, 0
        %s517 = sadd.s32 %s516, %s514
        %s518 = smul.addr %s517, 8
        %s519 = scalar_lea.vmem %s3, %s518
        // Predicated region
        $region70: #{conv_block.2} parent=64 // pred_check
          %p520 = pneg %p99
        $region71: #{conv_block.2} parent=64 // pred_check_branch
          %522 = sbr.rel (%p520) target = $region73
        $region72: #{conv_block.2} parent=64 // pred_region
          %s524 = ssub.s32 128, 128
          %525 = vsyncadd %s509, %s524
          %s526 = sadd.s32 %s23, %s22
          %s527 = smul.addr %s526, 128
          %s528 = scalar_lea.hbm %s2, %s527
          %s530 = sshll.u32 %s512, 4
          %s531 = int_to_ptr.vmem [resolvable:$true] %s530
          %533 = dma.vmem_to_hbm [thread:$0]  %s531, 128, %s528, %s509
        $region73: #{conv_block.2} parent=64 // pred_fallthru
          _
        // Predicated region
        $region74: #{conv_block.2} parent=64 // pred_check
          %p534 = pneg %p127
        $region75: #{conv_block.2} parent=64 // pred_check_branch
          %536 = sbr.rel (%p534) target = $region77
        $region76: #{conv_block.2} parent=64 // pred_region
          _
        $region77: #{conv_block.2} parent=64 // pred_fallthru
          _
      $region65: #{conv_block.2} parent=5 // pred_fallthru
        _
      %p537 = scmp.le.s32.totalorder 2, %s13
      // Predicated region
      $region78: #{conv_block.2} parent=5 // pred_check
        %p538 = pneg %p537
      $region79: #{conv_block.2} parent=5 // pred_check_branch
        %540 = sbr.rel (%p538) target = $region81
      $region80: #{conv_block.2} parent=5 // pred_region
        %s541 = ssub.s32 %s13, 2
        // Predicated region
        $region82: #{conv_block.2} parent=80 // pred_check
          %p542 = pneg %p105
        $region83: #{conv_block.2} parent=80 // pred_check_branch
          %544 = sbr.rel (%p542) target = $region85
        $region84: #{conv_block.2} parent=80 // pred_region
          %s545 = sand.u32 %s90, 1
          %s546 = scalar_lea.sflag [#allocation4], %s545
          %s547 = sand.u32 %s90, 1
          %s548 = smul.addr %s547, 8
          %s549 = scalar_lea.vmem [#allocation3], %s548
          %550 = dma.done %s546, 128
        $region85: #{conv_block.2} parent=80 // pred_fallthru
          _
        // Predicated region
        $region86: #{conv_block.2} parent=80 // pred_check
          %p551 = pneg %p133
        $region87: #{conv_block.2} parent=80 // pred_check_branch
          %553 = sbr.rel (%p551) target = $region89
        $region88: #{conv_block.2} parent=80 // pred_region
          %p554 = scmp.lt.s32.totalorder %s24, 1
          %s555 = scalar_select %p554, %s24, 1
          %p556 = scmp.lt.s32.totalorder %s25, 0
          %s557 = scalar_select %p556, %s25, 0
          %s558 = sadd.s32 %s557, %s555
          %s559 = smul.addr %s558, 8
          %s560 = scalar_lea.vmem %s3, %s559
        $region89: #{conv_block.2} parent=80 // pred_fallthru
          _
      $region81: #{conv_block.2} parent=5 // pred_fallthru
        _
    $region6: #{conv_block.2} parent=1 // loop_footer
      %s17 = sadd.s32 1, %s13
    $region7: #{conv_block.2} parent=1 // loop_footer_branch
      %12 = sbr.rel target = $region3
    $region8: #{conv_block.2} parent=1 // loop_exit
      _
    %561 = vsyncpa [#allocation4], 1
    %s562 = scalar_lea.sflag [#allocation4], 1
    %563 = vsyncpa %s562, 1

// kernel: conv_block.3
$region0: #{conv_block.3}
  #allocation0 [shape = 'u32[]', space=smem, size = 0x4, offset = 0x4, fixed_abs, tag = 'smem constant byte address 0x4 - core index']
  #allocation1 [shape = 'u32[144,128]{1,0:T(1,128)}', space=vmem, size = 0x12000, scoped, tag = 'internal scratch']
  %s0 = inlined_call_operand.hbm [shape: f32[2,8,16], index: 0, kind: input, shape index: {}, may-alias: {0,2}]
  %s1 = inlined_call_operand.vmem [shape: f32[2,8,1], index: 1, kind: input, shape index: {}]
  %s2 = inlined_call_operand.hbm [shape: f32[2,8,16], index: 2, kind: output, shape index: {}, may-alias: {0,2}]
  %s3 = sld [smem:[#allocation0]]
  $region45: #{conv_block.3} parent=0
    _
  %s5 = ssub.s32 1, %s3
  %s6 = scalar_select 0, %s5, %s3
  $region1: #{conv_block.3} parent=0
    #allocation2 [shape = 'u8[8192]{0}', space=vmem, size = 0x2000, scoped, tag = 'input window, operand 0']
    #allocation3 [shape = 's32[2]{0}', space=sflag, size = 0x8, scoped, tag = 'scoped memory for conv_block.3']
    #allocation4 [shape = 's32[2]{0}', space=sflag, size = 0x8, scoped, tag = 'scoped memory for conv_block.3']
    #allocation5 [shape = 'u8[8192]{0}', space=vmem, size = 0x2000, scoped, tag = 'output window, operand 0']
    %7 = vsyncpa [#allocation3], 0
    %s8 = scalar_lea.sflag [#allocation3], 1
    %9 = vsyncpa %s8, 0
    %10 = vsyncpa [#allocation4], 0
    %s11 = scalar_lea.sflag [#allocation4], 1
    %12 = vsyncpa %s11, 0
    loop: start=0, step=1, limit=4
    $region2: #{conv_block.3} parent=1 // loop_pre_header
      _
    $region3: #{conv_block.3} parent=1 // loop_header
      %s14 = sphi 0, %s18
      %p15 = scmp.ge.s32.totalorder %s14, 4
      %s21 = sphi 0, %s33
      %s22 = sphi 0, %s29
      %s23 = sphi 0, %s21
      %s24 = sphi 0, %s22
      %s25 = sphi 0, %s23
      %s26 = sphi 0, %s24
      %s38 = sphi 0, %s40
      %s41 = sphi 0, %s38
      %s42 = sphi 0, %s41
      %s58 = sphi 0, %s42
      %s62 = sphi 0, %s62
      %s64 = sphi 0, %s62
      %s65 = sphi 0, %s64
      %s79 = sphi 0, %s65
      %s87 = sphi 0, %s89
      %s90 = sphi 0, %s87
      %s91 = sphi 0, %s90
      %s107 = sphi 0, %s91
    $region4: #{conv_block.3} parent=1 // loop_header_branch
      %17 = sbr.rel (%p15) target = $region8
    $region5: #{conv_block.3} parent=1 // loop_body
      %s19 = ssub.s32 %s14, 1
      %s20 = ssub.s32 %s14, 2
      %s27 = sadd.s32 1, %s22
      %p28 = scmp.ge.s32.totalorder %s27, 1
      %s29 = scalar_select %p28, 0, %s27
      %s30 = sadd.s32 1, %s21
      %s31 = scalar_select %p28, %s30, %s21
      %p32 = scmp.ge.s32.totalorder %s31, 2
      %s33 = scalar_select %p32, 0, %s31
      %s34 = ssub.s32 %s21, %s33
      %s35 = ssub.s32 %s22, %s29
      %s36 = sor.u32 %s34, %s35
      %p37 = scmp.eq.s32.totalorder %s36, 0
      %s39 = sadd.s32 %s38, 1
      %s40 = scalar_select %p37, %s38, %s39
      %p43 = pneg %p37
      %p44 = scmp.eq.s32.totalorder %s14, 1
      %p45 = por %p43, %p44
      %p46 = scmp.ne.s32.totalorder %s38, %s41
      %p47 = scmp.eq.s32.totalorder %s14, 0
      %p48 = por %p46, %p47
      %p49 = scmp.ne.s32.totalorder %s38, %s41
      %p50 = scmp.eq.s32.totalorder %s19, 1
      %p51 = por %p49, %p50
      %p52 = scmp.ne.s32.totalorder %s41, %s42
      %p53 = scmp.eq.s32.totalorder %s19, 0
      %p54 = por %p52, %p53
      %p55 = scmp.ne.s32.totalorder %s41, %s42
      %p56 = scmp.eq.s32.totalorder %s20, 1
      %p57 = por %p55, %p56
      %p59 = scmp.ne.s32.totalorder %s42, %s58
      %p60 = scmp.eq.s32.totalorder %s20, 0
      %p61 = por %p59, %p60
      %s63 = sadd.s32 %s62, 1
      %p66 = scmp.eq.s32.totalorder %s14, 1
      %p67 = scmp.ne.s32.totalorder %s62, %s64
      %p68 = scmp.eq.s32.totalorder %s14, 0
      %p69 = por %p67, %p68
      %p70 = scmp.ne.s32.totalorder %s62, %s64
      %p71 = scmp.eq.s32.totalorder %s19, 1
      %p72 = por %p70, %p71
      %p73 = scmp.ne.s32.totalorder %s64, %s65
      %p74 = scmp.eq.s32.totalorder %s19, 0
      %p75 = por %p73, %p74
      %p76 = scmp.ne.s32.totalorder %s64, %s65
      %p77 = scmp.eq.s32.totalorder %s20, 1
      %p78 = por %p76, %p77
      %p80 = scmp.ne.s32.totalorder %s65, %s79
      %p81 = scmp.eq.s32.totalorder %s20, 0
      %p82 = por %p80, %p81
      %s83 = ssub.s32 %s21, %s33
      %s84 = ssub.s32 %s22, %s29
      %s85 = sor.u32 %s83, %s84
      %p86 = scmp.eq.s32.totalorder %s85, 0
      %s88 = sadd.s32 %s87, 1
      %s89 = scalar_select %p86, %s87, %s88
      %p92 = pneg %p86
      %p93 = scmp.eq.s32.totalorder %s14, 1
      %p94 = por %p92, %p93
      %p95 = scmp.ne.s32.totalorder %s87, %s90
      %p96 = scmp.eq.s32.totalorder %s14, 0
      %p97 = por %p95, %p96
      %p98 = scmp.ne.s32.totalorder %s87, %s90
      %p99 = scmp.eq.s32.totalorder %s19, 1
      %p100 = por %p98, %p99
      %p101 = scmp.ne.s32.totalorder %s90, %s91
      %p102 = scmp.eq.s32.totalorder %s19, 0
      %p103 = por %p101, %p102
      %p104 = scmp.ne.s32.totalorder %s90, %s91
      %p105 = scmp.eq.s32.totalorder %s20, 1
      %p106 = por %p104, %p105
      %p108 = scmp.ne.s32.totalorder %s91, %s107
      %p109 = scmp.eq.s32.totalorder %s20, 0
      %p110 = por %p108, %p109
      %p111 = scmp.le.s32.totalorder 1, %s14
      %p112 = scmp.lt.s32.totalorder %s14, 3
      %p113 = pnand %p111, %p112
      %p114 = pneg %p113
      // Predicated region
      $region9: #{conv_block.3} parent=5 // pred_check
        _
      $region10: #{conv_block.3} parent=5 // pred_check_branch
        %116 = sbr.rel (%p113) target = $region12
      $region11: #{conv_block.3} parent=5 // pred_region
        %s117 = ssub.s32 %s14, 1
        // Predicated region
        $region13: #{conv_block.3} parent=11 // pred_check
          %p118 = pneg %p75
        $region14: #{conv_block.3} parent=11 // pred_check_branch
          %120 = sbr.rel (%p118) target = $region16
        $region15: #{conv_block.3} parent=11 // pred_region
          _
        $region16: #{conv_block.3} parent=11 // pred_fallthru
          _
      $region12: #{conv_block.3} parent=5 // pred_fallthru
        _
      %p121 = scmp.lt.s32.totalorder %s14, 2
      // Predicated region
      $region17: #{conv_block.3} parent=5 // pred_check
        %p122 = pneg %p121
      $region18: #{conv_block.3} parent=5 // pred_check_branch
        %124 = sbr.rel (%p122) target = $region20
      $region19: #{conv_block.3} parent=5 // pred_region
        // Predicated region
        $region21: #{conv_block.3} parent=19 // pred_check
          %p125 = pneg %p48
        $region22: #{conv_block.3} parent=19 // pred_check_branch
          %127 = sbr.rel (%p125) target = $region24
        $region23: #{conv_block.3} parent=19 // pred_region
          %s128 = sand.u32 %s38, 1
          %s129 = scalar_lea.sflag [#allocation3], %s128
          %s130 = sand.u32 %s38, 1
          %s131 = smul.addr %s130, 8
          %s132 = scalar_lea.vmem [#allocation2], %s131
          %s134 = ssub.s32 128, 128
          %135 = vsyncadd %s129, %s134
          %s136 = sadd.s32 %s22, %s21
          %s137 = smul.addr %s136, 128
          %s138 = scalar_lea.hbm %s0, %s137
          %s140 = sshll.u32 %s132, 4
          %s141 = int_to_ptr.vmem [resolvable:$true] %s140
          %143 = dma.hbm_to_vmem [thread:$0]  %s138, 128, %s141, %s129
        $region24: #{conv_block.3} parent=19 // pred_fallthru
          _
      $region20: #{conv_block.3} parent=5 // pred_fallthru
        _
      %p144 = scmp.le.s32.totalorder 1, %s14
      %p145 = scmp.lt.s32.totalorder %s14, 3
      %p146 = pnand %p144, %p145
      %p147 = pneg %p146
      // Predicated region
      $region25: #{conv_block.3} parent=5 // pred_check
        _
      $region26: #{conv_block.3} parent=5 // pred_check_branch
        %149 = sbr.rel (%p146) target = $region28
      $region27: #{conv_block.3} parent=5 // pred_region
        %s150 = ssub.s32 %s14, 1
        %s151 = sand.u32 %s41, 1
        %s152 = scalar_lea.sflag [#allocation3], %s151
        %s153 = sand.u32 %s41, 1
        %s154 = smul.addr %s153, 8
        %s155 = scalar_lea.vmem [#allocation2], %s154
        // Predicated region
        $region29: #{conv_block.3} parent=27 // pred_check
          %p156 = pneg %p54
        $region30: #{conv_block.3} parent=27 // pred_check_branch
          %158 = sbr.rel (%p156) target = $region32
        $region31: #{conv_block.3} parent=27 // pred_region
          %159 = dma.done %s152, 128
        $region32: #{conv_block.3} parent=27 // pred_fallthru
          _
        %s160 = sand.u32 %s41, 1
        %s161 = scalar_lea.sflag [#allocation3], %s160
        %s162 = sand.u32 %s41, 1
        %s163 = smul.addr %s162, 8
        %s164 = scalar_lea.vmem [#allocation2], %s163
        %p165 = pneg %p54
        %p166 = pneg %p51
        %p167 = pneg %p75
        %p168 = pneg %p72
        %p169 = pneg %p103
        %p170 = pneg %p100
        %s171 = sand.u32 %s90, 1
        %s172 = scalar_lea.sflag [#allocation4], %s171
        %s173 = sand.u32 %s90, 1
        %s174 = smul.addr %s173, 8
        %s175 = scalar_lea.vmem [#allocation5], %s174
        %v176 = vld [vmem:[%s155] sm:$0xff]
        %v177 = vld [vmem:[%s1] sm:$0xff]
        %179 = vset.pattern.permute.xlu0 0
        %180 = vperm.xlu0 %179, %v177
        %v181 = vpop.permute.xlu0 %180
        %v183 = vmul.f32 %v176, %v181
        %s184 = scalar_lea.vmem %s1, 8
        %v185 = vld [vmem:[%s184] sm:$0xff]
        %187 = vset.pattern.permute.xlu0 0
        %188 = vperm.xlu0 %187, %v185
        %v189 = vpop.permute.xlu0 %188
        %v191 = vadd.f32 %v183, %v189
        %v192 = vmax.f32 %v191, 0.0
        %vm193 = vcmask 130048
        %194 = vst.msk [vmem:[%s175] sm:$0xff] %vm193, %v192
        %s195 = sand.u32 %s90, 1
        %s196 = scalar_lea.sflag [#allocation4], %s195
        %s197 = sand.u32 %s90, 1
        %s198 = smul.addr %s197, 8
        %s199 = scalar_lea.vmem [#allocation5], %s198
        // Predicated region
        $region33: #{conv_block.3} parent=27 // pred_check
          %p200 = pneg %p100
        $region34: #{conv_block.3} parent=27 // pred_check_branch
          %202 = sbr.rel (%p200) target = $region36
        $region35: #{conv_block.3} parent=27 // pred_region
          %s204 = ssub.s32 128, 128
          %205 = vsyncadd %s196, %s204
          %s206 = sadd.s32 %s24, %s23
          %s207 = smul.addr %s206, 128
          %s208 = scalar_lea.hbm %s2, %s207
          %s210 = sshll.u32 %s199, 4
          %s211 = int_to_ptr.vmem [resolvable:$true] %s210
          %213 = dma.vmem_to_hbm [thread:$0]  %s211, 128, %s208, %s196
        $region36: #{conv_block.3} parent=27 // pred_fallthru
          _
      $region28: #{conv_block.3} parent=5 // pred_fallthru
        _
      %p214 = scmp.le.s32.totalorder 2, %s14
      // Predicated region
      $region37: #{conv_block.3} parent=5 // pred_check
        %p215 = pneg %p214
      $region38: #{conv_block.3} parent=5 // pred_check_branch
        %217 = sbr.rel (%p215) target = $region40
      $region39: #{conv_block.3} parent=5 // pred_region
        %s218 = ssub.s32 %s14, 2
        // Predicated region
        $region41: #{conv_block.3} parent=39 // pred_check
          %p219 = pneg %p106
        $region42: #{conv_block.3} parent=39 // pred_check_branch
          %221 = sbr.rel (%p219) target = $region44
        $region43: #{conv_block.3} parent=39 // pred_region
          %s222 = sand.u32 %s91, 1
          %s223 = scalar_lea.sflag [#allocation4], %s222
          %s224 = sand.u32 %s91, 1
          %s225 = smul.addr %s224, 8
          %s226 = scalar_lea.vmem [#allocation5], %s225
          %227 = dma.done %s223, 128
        $region44: #{conv_block.3} parent=39 // pred_fallthru
          _
      $region40: #{conv_block.3} parent=5 // pred_fallthru
        _
    $region6: #{conv_block.3} parent=1 // loop_footer
      %s18 = sadd.s32 1, %s14
    $region7: #{conv_block.3} parent=1 // loop_footer_branch
      %13 = sbr.rel target = $region3
    $region8: #{conv_block.3} parent=1 // loop_exit
      _
    %228 = vsyncpa [#allocation3], 1
    %s229 = scalar_lea.sflag [#allocation3], 1
    %230 = vsyncpa %s229, 1
    %231 = vsyncpa [#allocation4], 1
    %s232 = scalar_lea.sflag [#allocation4], 1
    %233 = vsyncpa %s232, 1

</llo_original>
